<compile_context>
chip_gen: v5e
topology: v5e:2x2
jax: 0.10.0
libtpu: 0.0.40
codegen_flags: <defaults>
</compile_context>

<pallas_src>
import jax
import jax.numpy as jnp
from jax.experimental import pallas as pl
from jax.experimental.pallas import tpu as pltpu


def _pe2d_add_kernel(x_ref, h_add_ref, w_add_ref, o_ref):
    """x_ref/o_ref: (1, C, H, W); h_add_ref: (C/2, H, 1); w_add_ref: (C/2, 1, W)."""
    c_half = h_add_ref.shape[0]

    # Channels [0, C/2): h positional term, constant along W -> lane splat.
    x_top = x_ref[0, :c_half, :, :].astype(jnp.float32)
    o_ref[0, :c_half, :, :] = (x_top + h_add_ref[...]).astype(o_ref.dtype)

    # Channels [C/2, C): w positional term, constant along H -> sublane splat.
    x_bot = x_ref[0, c_half:, :, :].astype(jnp.float32)
    o_ref[0, c_half:, :, :] = (x_bot + w_add_ref[...]).astype(o_ref.dtype)


def generate_encoder(in_channels, max_len):
    """JAX port of PositionalEncoding2D.generate_encoder (module __init__ buffer)."""
    pos = jnp.arange(max_len, dtype=jnp.float32)[:, None]
    i = jnp.arange(in_channels, dtype=jnp.float32)[None, :]
    angle_rates = 1.0 / jnp.power(10000.0, (2.0 * jnp.floor(i / 2.0)) / in_channels)
    pe = pos * angle_rates
    pe = pe.at[:, 0::2].set(jnp.sin(pe[:, 0::2]))
    pe = pe.at[:, 1::2].set(jnp.cos(pe[:, 1::2]))
    return pe


def positional_encoding_2d(x, h_encoder, w_encoder, h_weight, h_bias, w_weight, w_bias):
    """Pallas equivalent of PositionalEncoding2D.forward (eval mode)."""
    B, C, H, W = x.shape
    assert C % 2 == 0, "in_channels must be even"
    C2 = C // 2
    f32 = jnp.float32

    # Tiny linear projections (nn.Linear: y = e @ W^T + b), evaluated once per call.
    h_pos = jnp.dot(h_encoder[:H].astype(f32), h_weight.astype(f32).T) + h_bias.astype(f32)  # (H, C2)
    w_pos = jnp.dot(w_encoder[:W].astype(f32), w_weight.astype(f32).T) + w_bias.astype(f32)  # (W, C2)

    # Pre-shape so the kernel only needs native unit-dim broadcasts.
    h_add = jnp.transpose(h_pos)[:, :, None]   # (C2, H, 1)
    w_add = jnp.transpose(w_pos)[:, None, :]   # (C2, 1, W)

    return pl.pallas_call(
        _pe2d_add_kernel,
        out_shape=jax.ShapeDtypeStruct((B, C, H, W), x.dtype),
        grid_spec=pltpu.PrefetchScalarGridSpec(
            num_scalar_prefetch=0,
            grid=(B,),
            in_specs=[
                pl.BlockSpec((1, C, H, W), lambda b: (b, 0, 0, 0)),   # x
                pl.BlockSpec((C2, H, 1), lambda b: (0, 0, 0)),        # h_add (batch-invariant)
                pl.BlockSpec((C2, 1, W), lambda b: (0, 0, 0)),        # w_add (batch-invariant)
            ],
            out_specs=pl.BlockSpec((1, C, H, W), lambda b: (b, 0, 0, 0)),
        ),
        compiler_params=pltpu.CompilerParams(
            dimension_semantics=("parallel",),
        ),
    )(x, h_add, w_add)


def _reference(x, h_encoder, w_encoder, h_weight, h_bias, w_weight, w_bias):
    """Pure-JAX transcription of the PyTorch forward (eval mode)."""
    B, C, H, W = x.shape
    C2 = C // 2
    h_pos = h_encoder[:H] @ h_weight.T + h_bias            # (H, C2)
    w_pos = w_encoder[:W] @ w_weight.T + w_bias            # (W, C2)
    h_b = jnp.broadcast_to(h_pos[:, None, :], (H, W, C2))
    w_b = jnp.broadcast_to(w_pos[None, :, :], (H, W, C2))
    pos = jnp.transpose(jnp.concatenate([h_b, w_b], axis=2), (2, 0, 1))  # (C, H, W)
    return x + pos[None]


if __name__ == "__main__":
    B, C, H, W = 2, 64, 16, 32          # batch, in_channels, feature-map height/width
    max_h, max_w = 64, 128
    C2 = C // 2

    key = jax.random.PRNGKey(0)
    kx, k1, k2, k3, k4 = jax.random.split(key, 5)
    x = jax.random.normal(kx, (B, C, H, W), dtype=jnp.float32)
    h_weight = jax.random.normal(k1, (C2, C2), dtype=jnp.float32) / jnp.sqrt(float(C2))
    h_bias = jax.random.normal(k2, (C2,), dtype=jnp.float32) * 0.1
    w_weight = jax.random.normal(k3, (C2, C2), dtype=jnp.float32) / jnp.sqrt(float(C2))
    w_bias = jax.random.normal(k4, (C2,), dtype=jnp.float32) * 0.1

    h_encoder = generate_encoder(C2, max_h)   # module __init__ buffers
    w_encoder = generate_encoder(C2, max_w)

    run = jax.jit(positional_encoding_2d)
    out = jax.block_until_ready(
        run(x, h_encoder, w_encoder, h_weight, h_bias, w_weight, w_bias)
    )

    ref = _reference(x, h_encoder, w_encoder, h_weight, h_bias, w_weight, w_bias)
    assert out.shape == ref.shape
    max_err = float(jnp.max(jnp.abs(out - ref)))
    assert jnp.allclose(out, ref, atol=1e-5, rtol=1e-5), max_err
    print("KERNEL_OK")
</pallas_src>

<mosaic_0001>
module attributes {stable_mosaic.version = 11 : i64} {
  func.func @_pe2d_add_kernel(%arg0: i32, %arg1: memref<1x64x16x32xf32, #tpu.memory_space<vmem>>, %arg2: memref<32x16x1xf32, #tpu.memory_space<vmem>>, %arg3: memref<32x1x32xf32, #tpu.memory_space<vmem>>, %arg4: memref<1x64x16x32xf32, #tpu.memory_space<vmem>>) attributes {dimension_semantics = [#tpu.dimension_semantics<parallel>], iteration_bounds = array<i64: 2>, scalar_prefetch = 0 : i64, scratch_operands = 0 : i64, tpu.core_type = #tpu.core_type<tc>, window_params = [{transform_indices = @transform_0, window_bounds = array<i64: 1, 64, 16, 32>}, {pipeline_mode = #tpu.pipeline_mode<synchronous>, transform_indices = @transform_1, window_bounds = array<i64: 32, 16, 1>}, {pipeline_mode = #tpu.pipeline_mode<synchronous>, transform_indices = @transform_2, window_bounds = array<i64: 32, 1, 32>}, {transform_indices = @transform_3, window_bounds = array<i64: 1, 64, 16, 32>}]} {
    %c0 = arith.constant 0 : index
    %c0_0 = arith.constant 0 : index
    %c0_1 = arith.constant 0 : index
    %c0_2 = arith.constant 0 : index
    %0 = vector.load %arg1[%c0, %c0_0, %c0_1, %c0_2] : memref<1x64x16x32xf32, #tpu.memory_space<vmem>>, vector<1x32x16x32xf32>
    %1 = vector.shape_cast %0 : vector<1x32x16x32xf32> to vector<32x16x32xf32>
    %c0_3 = arith.constant 0 : index
    %c0_4 = arith.constant 0 : index
    %c0_5 = arith.constant 0 : index
    %2 = vector.load %arg2[%c0_3, %c0_4, %c0_5] : memref<32x16x1xf32, #tpu.memory_space<vmem>>, vector<32x16x1xf32>
    %3 = vector.broadcast %2 : vector<32x16x1xf32> to vector<32x16x32xf32>
    %4 = arith.addf %1, %3 : vector<32x16x32xf32>
    %c0_6 = arith.constant 0 : index
    %c0_7 = arith.constant 0 : index
    %c0_8 = arith.constant 0 : index
    %c0_9 = arith.constant 0 : index
    %5 = vector.load %arg4[%c0_6, %c0_7, %c0_8, %c0_9] : memref<1x64x16x32xf32, #tpu.memory_space<vmem>>, vector<1x32x16x32xf32>
    %6 = vector.shape_cast %5 : vector<1x32x16x32xf32> to vector<32x16x32xf32>
    %7 = vector.shape_cast %4 : vector<32x16x32xf32> to vector<1x32x16x32xf32>
    tpu.vector_store %arg4[%c0_6, %c0_7, %c0_8, %c0_9], %7 {strides = array<i32>} : memref<1x64x16x32xf32, #tpu.memory_space<vmem>>, vector<1x32x16x32xf32>,
    %c0_10 = arith.constant 0 : index
    %c32 = arith.constant 32 : index
    %c0_11 = arith.constant 0 : index
    %c0_12 = arith.constant 0 : index
    %8 = vector.load %arg1[%c0_10, %c32, %c0_11, %c0_12] : memref<1x64x16x32xf32, #tpu.memory_space<vmem>>, vector<1x32x16x32xf32>
    %9 = vector.shape_cast %8 : vector<1x32x16x32xf32> to vector<32x16x32xf32>
    %c0_13 = arith.constant 0 : index
    %c0_14 = arith.constant 0 : index
    %c0_15 = arith.constant 0 : index
    %10 = vector.load %arg3[%c0_13, %c0_14, %c0_15] : memref<32x1x32xf32, #tpu.memory_space<vmem>>, vector<32x1x32xf32>
    %11 = vector.broadcast %10 : vector<32x1x32xf32> to vector<32x16x32xf32>
    %12 = arith.addf %9, %11 : vector<32x16x32xf32>
    %c0_16 = arith.constant 0 : index
    %c32_17 = arith.constant 32 : index
    %c0_18 = arith.constant 0 : index
    %c0_19 = arith.constant 0 : index
    %13 = vector.load %arg4[%c0_16, %c32_17, %c0_18, %c0_19] : memref<1x64x16x32xf32, #tpu.memory_space<vmem>>, vector<1x32x16x32xf32>
    %14 = vector.shape_cast %13 : vector<1x32x16x32xf32> to vector<32x16x32xf32>
    %15 = vector.shape_cast %12 : vector<32x16x32xf32> to vector<1x32x16x32xf32>
    tpu.vector_store %arg4[%c0_16, %c32_17, %c0_18, %c0_19], %15 {strides = array<i32>} : memref<1x64x16x32xf32, #tpu.memory_space<vmem>>, vector<1x32x16x32xf32>,
    return
  }
  func.func @transform_0(%arg0: i32) -> (i32, i32, i32, i32) {
    %c0_i32 = arith.constant 0 : i32
    %c0_i32_0 = arith.constant 0 : i32
    %c0_i32_1 = arith.constant 0 : i32
    %c0_i32_2 = arith.constant 0 : i32
    return %arg0, %c0_i32, %c0_i32_0, %c0_i32_1 : i32, i32, i32, i32
  }
  func.func @transform_1(%arg0: i32) -> (i32, i32, i32) {
    %c0_i32 = arith.constant 0 : i32
    %c0_i32_0 = arith.constant 0 : i32
    %c0_i32_1 = arith.constant 0 : i32
    %c0_i32_2 = arith.constant 0 : i32
    return %c0_i32, %c0_i32_0, %c0_i32_1 : i32, i32, i32
  }
  func.func @transform_2(%arg0: i32) -> (i32, i32, i32) {
    %c0_i32 = arith.constant 0 : i32
    %c0_i32_0 = arith.constant 0 : i32
    %c0_i32_1 = arith.constant 0 : i32
    %c0_i32_2 = arith.constant 0 : i32
    return %c0_i32, %c0_i32_0, %c0_i32_1 : i32, i32, i32
  }
  func.func @transform_3(%arg0: i32) -> (i32, i32, i32, i32) {
    %c0_i32 = arith.constant 0 : i32
    %c0_i32_0 = arith.constant 0 : i32
    %c0_i32_1 = arith.constant 0 : i32
    %c0_i32_2 = arith.constant 0 : i32
    return %arg0, %c0_i32, %c0_i32_0, %c0_i32_1 : i32, i32, i32, i32
  }
}

</mosaic_0001>

<llo_original>
// kernel: positional_encoding_2d.1
$region0: #{positional_encoding_2d.1}
  #allocation0 [shape = 'u32[]', space=smem, size = 0x4, offset = 0x4, fixed_abs, tag = 'smem constant byte address 0x4 - core index']
  #allocation1 [shape = 'u32[72,128]{1,0:T(1,128)}', space=vmem, size = 0x9000, scoped, tag = 'internal scratch']
  %s0 = inlined_call_operand.vmem [shape: f32[2,64,16,32], index: 0, kind: input, shape index: {}]
  %s1 = inlined_call_operand.vmem [shape: f32[32,16,1], index: 1, kind: input, shape index: {}]
  %s2 = inlined_call_operand.vmem [shape: f32[32,1,32], index: 2, kind: input, shape index: {}]
  %s3 = inlined_call_operand.vmem [shape: f32[2,64,16,32], index: 3, kind: output, shape index: {}]
  %s4 = sld [smem:[#allocation0]]
  $region45: #{positional_encoding_2d.1} parent=0
    _
  %s6 = ssub.s32 1, %s4
  %s7 = scalar_select 0, %s6, %s4
  loop: start=0, step=1, limit=4
  $region2: #{positional_encoding_2d.1} parent=0 // loop_pre_header
    _
  $region3: #{positional_encoding_2d.1} parent=0 // loop_header
    %s9 = sphi 0, %s13
    %p10 = scmp.ge.s32.totalorder %s9, 4
    %s19 = sphi 0, %s21
    %s22 = sphi 0, %s19
    %s23 = sphi 0, %s22
    %s39 = sphi 0, %s23
    %s43 = sphi 0, %s43
    %s45 = sphi 0, %s43
    %s46 = sphi 0, %s45
    %s60 = sphi 0, %s46
    %s64 = sphi 0, %s64
    %s66 = sphi 0, %s64
    %s67 = sphi 0, %s66
    %s81 = sphi 0, %s67
    %s87 = sphi 0, %s89
    %s90 = sphi 0, %s87
    %s91 = sphi 0, %s90
    %s107 = sphi 0, %s91
  $region4: #{positional_encoding_2d.1} parent=0 // loop_header_branch
    %12 = sbr.rel (%p10) target = $region8
  $region5: #{positional_encoding_2d.1} parent=0 // loop_body
    %s14 = ssub.s32 %s9, 1
    %s15 = ssub.s32 %s9, 2
    %s16 = sadd.s32 %s9, 1
    %s17 = ssub.s32 %s9, %s16
    %p18 = scmp.eq.s32.totalorder %s17, 0
    %s20 = sadd.s32 %s19, 1
    %s21 = scalar_select %p18, %s19, %s20
    %p24 = pneg %p18
    %p25 = scmp.eq.s32.totalorder %s9, 1
    %p26 = por %p24, %p25
    %p27 = scmp.ne.s32.totalorder %s19, %s22
    %p28 = scmp.eq.s32.totalorder %s9, 0
    %p29 = por %p27, %p28
    %p30 = scmp.ne.s32.totalorder %s19, %s22
    %p31 = scmp.eq.s32.totalorder %s14, 1
    %p32 = por %p30, %p31
    %p33 = scmp.ne.s32.totalorder %s22, %s23
    %p34 = scmp.eq.s32.totalorder %s14, 0
    %p35 = por %p33, %p34
    %p36 = scmp.ne.s32.totalorder %s22, %s23
    %p37 = scmp.eq.s32.totalorder %s15, 1
    %p38 = por %p36, %p37
    %p40 = scmp.ne.s32.totalorder %s23, %s39
    %p41 = scmp.eq.s32.totalorder %s15, 0
    %p42 = por %p40, %p41
    %s44 = sadd.s32 %s43, 1
    %p47 = scmp.eq.s32.totalorder %s9, 1
    %p48 = scmp.ne.s32.totalorder %s43, %s45
    %p49 = scmp.eq.s32.totalorder %s9, 0
    %p50 = por %p48, %p49
    %p51 = scmp.ne.s32.totalorder %s43, %s45
    %p52 = scmp.eq.s32.totalorder %s14, 1
    %p53 = por %p51, %p52
    %p54 = scmp.ne.s32.totalorder %s45, %s46
    %p55 = scmp.eq.s32.totalorder %s14, 0
    %p56 = por %p54, %p55
    %p57 = scmp.ne.s32.totalorder %s45, %s46
    %p58 = scmp.eq.s32.totalorder %s15, 1
    %p59 = por %p57, %p58
    %p61 = scmp.ne.s32.totalorder %s46, %s60
    %p62 = scmp.eq.s32.totalorder %s15, 0
    %p63 = por %p61, %p62
    %s65 = sadd.s32 %s64, 1
    %p68 = scmp.eq.s32.totalorder %s9, 1
    %p69 = scmp.ne.s32.totalorder %s64, %s66
    %p70 = scmp.eq.s32.totalorder %s9, 0
    %p71 = por %p69, %p70
    %p72 = scmp.ne.s32.totalorder %s64, %s66
    %p73 = scmp.eq.s32.totalorder %s14, 1
    %p74 = por %p72, %p73
    %p75 = scmp.ne.s32.totalorder %s66, %s67
    %p76 = scmp.eq.s32.totalorder %s14, 0
    %p77 = por %p75, %p76
    %p78 = scmp.ne.s32.totalorder %s66, %s67
    %p79 = scmp.eq.s32.totalorder %s15, 1
    %p80 = por %p78, %p79
    %p82 = scmp.ne.s32.totalorder %s67, %s81
    %p83 = scmp.eq.s32.totalorder %s15, 0
    %p84 = por %p82, %p83
    %s85 = ssub.s32 %s9, %s16
    %p86 = scmp.eq.s32.totalorder %s85, 0
    %s88 = sadd.s32 %s87, 1
    %s89 = scalar_select %p86, %s87, %s88
    %p92 = pneg %p86
    %p93 = scmp.eq.s32.totalorder %s9, 1
    %p94 = por %p92, %p93
    %p95 = scmp.ne.s32.totalorder %s87, %s90
    %p96 = scmp.eq.s32.totalorder %s9, 0
    %p97 = por %p95, %p96
    %p98 = scmp.ne.s32.totalorder %s87, %s90
    %p99 = scmp.eq.s32.totalorder %s14, 1
    %p100 = por %p98, %p99
    %p101 = scmp.ne.s32.totalorder %s90, %s91
    %p102 = scmp.eq.s32.totalorder %s14, 0
    %p103 = por %p101, %p102
    %p104 = scmp.ne.s32.totalorder %s90, %s91
    %p105 = scmp.eq.s32.totalorder %s15, 1
    %p106 = por %p104, %p105
    %p108 = scmp.ne.s32.totalorder %s91, %s107
    %p109 = scmp.eq.s32.totalorder %s15, 0
    %p110 = por %p108, %p109
    %p111 = scmp.le.s32.totalorder 1, %s9
    %p112 = scmp.lt.s32.totalorder %s9, 3
    %p113 = pnand %p111, %p112
    %p114 = pneg %p113
    // Predicated region
    $region9: #{positional_encoding_2d.1} parent=5 // pred_check
      _
    $region10: #{positional_encoding_2d.1} parent=5 // pred_check_branch
      %116 = sbr.rel (%p113) target = $region12
    $region11: #{positional_encoding_2d.1} parent=5 // pred_region
      %s117 = ssub.s32 %s9, 1
      // Predicated region
      $region13: #{positional_encoding_2d.1} parent=11 // pred_check
        %p118 = pneg %p56
      $region14: #{positional_encoding_2d.1} parent=11 // pred_check_branch
        %120 = sbr.rel (%p118) target = $region16
      $region15: #{positional_encoding_2d.1} parent=11 // pred_region
        _
      $region16: #{positional_encoding_2d.1} parent=11 // pred_fallthru
        _
      // Predicated region
      $region17: #{positional_encoding_2d.1} parent=11 // pred_check
        %p121 = pneg %p77
      $region18: #{positional_encoding_2d.1} parent=11 // pred_check_branch
        %123 = sbr.rel (%p121) target = $region20
      $region19: #{positional_encoding_2d.1} parent=11 // pred_region
        _
      $region20: #{positional_encoding_2d.1} parent=11 // pred_fallthru
        _
    $region12: #{positional_encoding_2d.1} parent=5 // pred_fallthru
      _
    %p124 = scmp.lt.s32.totalorder %s9, 2
    // Predicated region
    $region21: #{positional_encoding_2d.1} parent=5 // pred_check
      %p125 = pneg %p124
    $region22: #{positional_encoding_2d.1} parent=5 // pred_check_branch
      %127 = sbr.rel (%p125) target = $region24
    $region23: #{positional_encoding_2d.1} parent=5 // pred_region
      // Predicated region
      $region25: #{positional_encoding_2d.1} parent=23 // pred_check
        %p128 = pneg %p29
      $region26: #{positional_encoding_2d.1} parent=23 // pred_check_branch
        %130 = sbr.rel (%p128) target = $region28
      $region27: #{positional_encoding_2d.1} parent=23 // pred_region
        %p131 = scmp.lt.s32.totalorder %s9, 1
        %s132 = scalar_select %p131, %s9, 1
        %s133 = smul.addr %s132, 128
        %s134 = smul.addr %s133, 8
        %s135 = scalar_lea.vmem %s0, %s134
      $region28: #{positional_encoding_2d.1} parent=23 // pred_fallthru
        _
    $region24: #{positional_encoding_2d.1} parent=5 // pred_fallthru
      _
    %p136 = scmp.le.s32.totalorder 1, %s9
    %p137 = scmp.lt.s32.totalorder %s9, 3
    %p138 = pnand %p136, %p137
    %p139 = pneg %p138
    // Predicated region
    $region29: #{positional_encoding_2d.1} parent=5 // pred_check
      _
    $region30: #{positional_encoding_2d.1} parent=5 // pred_check_branch
      %141 = sbr.rel (%p138) target = $region32
    $region31: #{positional_encoding_2d.1} parent=5 // pred_region
      %s142 = ssub.s32 %s9, 1
      %p143 = scmp.lt.s32.totalorder %s14, 1
      %s144 = scalar_select %p143, %s14, 1
      %s145 = smul.addr %s144, 128
      %s146 = smul.addr %s145, 8
      %s147 = scalar_lea.vmem %s0, %s146
      %p148 = pneg %p35
      %p149 = pneg %p32
      %p150 = pneg %p56
      %p151 = pneg %p53
      %p152 = pneg %p77
      %p153 = pneg %p74
      %p154 = pneg %p103
      %p155 = pneg %p100
      %p156 = scmp.lt.s32.totalorder %s14, 1
      %s157 = scalar_select %p156, %s14, 1
      %s158 = smul.addr %s157, 128
      %s159 = smul.addr %s158, 8
      %s160 = scalar_lea.vmem %s3, %s159
      %p161 = scmp.lt.s32.totalorder %s14, 1
      %s162 = scalar_select %p161, %s14, 1
      %s163 = smul.addr %s162, 128
      %s164 = smul.addr %s163, 8
      %s165 = scalar_lea.vmem %s0, %s164
      %p166 = scmp.lt.s32.totalorder %s14, 1
      %s167 = scalar_select %p166, %s14, 1
      %s168 = smul.addr %s167, 128
      %s169 = smul.addr %s168, 8
      %s170 = scalar_lea.vmem %s3, %s169
      %v171 = vld [vmem:[%s165] sm:$0xff]
      %v172 = vld [vmem:[%s165 + $0x8] sm:$0xff]
      %v173 = vld [vmem:[%s165 + $0x10] sm:$0xff]
      %v174 = vld [vmem:[%s165 + $0x18] sm:$0xff]
      %v175 = vld [vmem:[%s165 + $0x20] sm:$0xff]
      %v176 = vld [vmem:[%s165 + $0x28] sm:$0xff]
      %v177 = vld [vmem:[%s165 + $0x30] sm:$0xff]
      %v178 = vld [vmem:[%s165 + $0x38] sm:$0xff]
      %v179 = vld [vmem:[%s165 + $0x40] sm:$0xff]
      %v180 = vld [vmem:[%s165 + $0x48] sm:$0xff]
      %v181 = vld [vmem:[%s165 + $0x50] sm:$0xff]
      %v182 = vld [vmem:[%s165 + $0x58] sm:$0xff]
      %v183 = vld [vmem:[%s165 + $0x60] sm:$0xff]
      %v184 = vld [vmem:[%s165 + $0x68] sm:$0xff]
      %v185 = vld [vmem:[%s165 + $0x70] sm:$0xff]
      %v186 = vld [vmem:[%s165 + $0x78] sm:$0xff]
      %v187 = vld [vmem:[%s165 + $0x80] sm:$0xff]
      %v188 = vld [vmem:[%s165 + $0x88] sm:$0xff]
      %v189 = vld [vmem:[%s165 + $0x90] sm:$0xff]
      %v190 = vld [vmem:[%s165 + $0x98] sm:$0xff]
      %v191 = vld [vmem:[%s165 + $0xa0] sm:$0xff]
      %v192 = vld [vmem:[%s165 + $0xa8] sm:$0xff]
      %v193 = vld [vmem:[%s165 + $0xb0] sm:$0xff]
      %v194 = vld [vmem:[%s165 + $0xb8] sm:$0xff]
      %v195 = vld [vmem:[%s165 + $0xc0] sm:$0xff]
      %v196 = vld [vmem:[%s165 + $0xc8] sm:$0xff]
      %v197 = vld [vmem:[%s165 + $0xd0] sm:$0xff]
      %v198 = vld [vmem:[%s165 + $0xd8] sm:$0xff]
      %v199 = vld [vmem:[%s165 + $0xe0] sm:$0xff]
      %v200 = vld [vmem:[%s165 + $0xe8] sm:$0xff]
      %v201 = vld [vmem:[%s165 + $0xf0] sm:$0xff]
      %v202 = vld [vmem:[%s165 + $0xf8] sm:$0xff]
      %v203 = vld [vmem:[%s165 + $0x100] sm:$0xff]
      %v204 = vld [vmem:[%s165 + $0x108] sm:$0xff]
      %v205 = vld [vmem:[%s165 + $0x110] sm:$0xff]
      %v206 = vld [vmem:[%s165 + $0x118] sm:$0xff]
      %v207 = vld [vmem:[%s165 + $0x120] sm:$0xff]
      %v208 = vld [vmem:[%s165 + $0x128] sm:$0xff]
      %v209 = vld [vmem:[%s165 + $0x130] sm:$0xff]
      %v210 = vld [vmem:[%s165 + $0x138] sm:$0xff]
      %v211 = vld [vmem:[%s165 + $0x140] sm:$0xff]
      %v212 = vld [vmem:[%s165 + $0x148] sm:$0xff]
      %v213 = vld [vmem:[%s165 + $0x150] sm:$0xff]
      %v214 = vld [vmem:[%s165 + $0x158] sm:$0xff]
      %v215 = vld [vmem:[%s165 + $0x160] sm:$0xff]
      %v216 = vld [vmem:[%s165 + $0x168] sm:$0xff]
      %v217 = vld [vmem:[%s165 + $0x170] sm:$0xff]
      %v218 = vld [vmem:[%s165 + $0x178] sm:$0xff]
      %v219 = vld [vmem:[%s165 + $0x180] sm:$0xff]
      %v220 = vld [vmem:[%s165 + $0x188] sm:$0xff]
      %v221 = vld [vmem:[%s165 + $0x190] sm:$0xff]
      %v222 = vld [vmem:[%s165 + $0x198] sm:$0xff]
      %v223 = vld [vmem:[%s165 + $0x1a0] sm:$0xff]
      %v224 = vld [vmem:[%s165 + $0x1a8] sm:$0xff]
      %v225 = vld [vmem:[%s165 + $0x1b0] sm:$0xff]
      %v226 = vld [vmem:[%s165 + $0x1b8] sm:$0xff]
      %v227 = vld [vmem:[%s165 + $0x1c0] sm:$0xff]
      %v228 = vld [vmem:[%s165 + $0x1c8] sm:$0xff]
      %v229 = vld [vmem:[%s165 + $0x1d0] sm:$0xff]
      %v230 = vld [vmem:[%s165 + $0x1d8] sm:$0xff]
      %v231 = vld [vmem:[%s165 + $0x1e0] sm:$0xff]
      %v232 = vld [vmem:[%s165 + $0x1e8] sm:$0xff]
      %v233 = vld [vmem:[%s165 + $0x1f0] sm:$0xff]
      %v234 = vld [vmem:[%s165 + $0x1f8] sm:$0xff]
      %v235 = vld [vmem:[%s1] sm:$0xff]
      %v236 = vld [vmem:[%s1 + $0x8] sm:$0xff]
      %v237 = vld [vmem:[%s1 + $0x10] sm:$0xff]
      %v238 = vld [vmem:[%s1 + $0x18] sm:$0xff]
      %v239 = vld [vmem:[%s1 + $0x20] sm:$0xff]
      %v240 = vld [vmem:[%s1 + $0x28] sm:$0xff]
      %v241 = vld [vmem:[%s1 + $0x30] sm:$0xff]
      %v242 = vld [vmem:[%s1 + $0x38] sm:$0xff]
      %v243 = vld [vmem:[%s1 + $0x40] sm:$0xff]
      %v244 = vld [vmem:[%s1 + $0x48] sm:$0xff]
      %v245 = vld [vmem:[%s1 + $0x50] sm:$0xff]
      %v246 = vld [vmem:[%s1 + $0x58] sm:$0xff]
      %v247 = vld [vmem:[%s1 + $0x60] sm:$0xff]
      %v248 = vld [vmem:[%s1 + $0x68] sm:$0xff]
      %v249 = vld [vmem:[%s1 + $0x70] sm:$0xff]
      %v250 = vld [vmem:[%s1 + $0x78] sm:$0xff]
      %v251 = vld [vmem:[%s1 + $0x80] sm:$0xff]
      %v252 = vld [vmem:[%s1 + $0x88] sm:$0xff]
      %v253 = vld [vmem:[%s1 + $0x90] sm:$0xff]
      %v254 = vld [vmem:[%s1 + $0x98] sm:$0xff]
      %v255 = vld [vmem:[%s1 + $0xa0] sm:$0xff]
      %v256 = vld [vmem:[%s1 + $0xa8] sm:$0xff]
      %v257 = vld [vmem:[%s1 + $0xb0] sm:$0xff]
      %v258 = vld [vmem:[%s1 + $0xb8] sm:$0xff]
      %v259 = vld [vmem:[%s1 + $0xc0] sm:$0xff]
      %v260 = vld [vmem:[%s1 + $0xc8] sm:$0xff]
      %v261 = vld [vmem:[%s1 + $0xd0] sm:$0xff]
      %v262 = vld [vmem:[%s1 + $0xd8] sm:$0xff]
      %v263 = vld [vmem:[%s1 + $0xe0] sm:$0xff]
      %v264 = vld [vmem:[%s1 + $0xe8] sm:$0xff]
      %v265 = vld [vmem:[%s1 + $0xf0] sm:$0xff]
      %v266 = vld [vmem:[%s1 + $0xf8] sm:$0xff]
      %v267 = vld [vmem:[%s1 + $0x100] sm:$0xff]
      %v268 = vld [vmem:[%s1 + $0x108] sm:$0xff]
      %v269 = vld [vmem:[%s1 + $0x110] sm:$0xff]
      %v270 = vld [vmem:[%s1 + $0x118] sm:$0xff]
      %v271 = vld [vmem:[%s1 + $0x120] sm:$0xff]
      %v272 = vld [vmem:[%s1 + $0x128] sm:$0xff]
      %v273 = vld [vmem:[%s1 + $0x130] sm:$0xff]
      %v274 = vld [vmem:[%s1 + $0x138] sm:$0xff]
      %v275 = vld [vmem:[%s1 + $0x140] sm:$0xff]
      %v276 = vld [vmem:[%s1 + $0x148] sm:$0xff]
      %v277 = vld [vmem:[%s1 + $0x150] sm:$0xff]
      %v278 = vld [vmem:[%s1 + $0x158] sm:$0xff]
      %v279 = vld [vmem:[%s1 + $0x160] sm:$0xff]
      %v280 = vld [vmem:[%s1 + $0x168] sm:$0xff]
      %v281 = vld [vmem:[%s1 + $0x170] sm:$0xff]
      %v282 = vld [vmem:[%s1 + $0x178] sm:$0xff]
      %v283 = vld [vmem:[%s1 + $0x180] sm:$0xff]
      %v284 = vld [vmem:[%s1 + $0x188] sm:$0xff]
      %v285 = vld [vmem:[%s1 + $0x190] sm:$0xff]
      %v286 = vld [vmem:[%s1 + $0x198] sm:$0xff]
      %v287 = vld [vmem:[%s1 + $0x1a0] sm:$0xff]
      %v288 = vld [vmem:[%s1 + $0x1a8] sm:$0xff]
      %v289 = vld [vmem:[%s1 + $0x1b0] sm:$0xff]
      %v290 = vld [vmem:[%s1 + $0x1b8] sm:$0xff]
      %v291 = vld [vmem:[%s1 + $0x1c0] sm:$0xff]
      %v292 = vld [vmem:[%s1 + $0x1c8] sm:$0xff]
      %v293 = vld [vmem:[%s1 + $0x1d0] sm:$0xff]
      %v294 = vld [vmem:[%s1 + $0x1d8] sm:$0xff]
      %v295 = vld [vmem:[%s1 + $0x1e0] sm:$0xff]
      %v296 = vld [vmem:[%s1 + $0x1e8] sm:$0xff]
      %v297 = vld [vmem:[%s1 + $0x1f0] sm:$0xff]
      %v298 = vld [vmem:[%s1 + $0x1f8] sm:$0xff]
      %300 = vset.pattern.permute.xlu0 0
      %301 = vperm.xlu0 %300, %v235
      %v302 = vpop.permute.xlu0 %301
      %305 = vset.pattern.permute.xlu0 0
      %306 = vperm.xlu0 %305, %v236
      %v307 = vpop.permute.xlu0 %306
      %310 = vset.pattern.permute.xlu0 0
      %311 = vperm.xlu0 %310, %v237
      %v312 = vpop.permute.xlu0 %311
      %315 = vset.pattern.permute.xlu0 0
      %316 = vperm.xlu0 %315, %v238
      %v317 = vpop.permute.xlu0 %316
      %320 = vset.pattern.permute.xlu0 0
      %321 = vperm.xlu0 %320, %v239
      %v322 = vpop.permute.xlu0 %321
      %325 = vset.pattern.permute.xlu0 0
      %326 = vperm.xlu0 %325, %v240
      %v327 = vpop.permute.xlu0 %326
      %330 = vset.pattern.permute.xlu0 0
      %331 = vperm.xlu0 %330, %v241
      %v332 = vpop.permute.xlu0 %331
      %335 = vset.pattern.permute.xlu0 0
      %336 = vperm.xlu0 %335, %v242
      %v337 = vpop.permute.xlu0 %336
      %340 = vset.pattern.permute.xlu0 0
      %341 = vperm.xlu0 %340, %v243
      %v342 = vpop.permute.xlu0 %341
      %345 = vset.pattern.permute.xlu0 0
      %346 = vperm.xlu0 %345, %v244
      %v347 = vpop.permute.xlu0 %346
      %350 = vset.pattern.permute.xlu0 0
      %351 = vperm.xlu0 %350, %v245
      %v352 = vpop.permute.xlu0 %351
      %355 = vset.pattern.permute.xlu0 0
      %356 = vperm.xlu0 %355, %v246
      %v357 = vpop.permute.xlu0 %356
      %360 = vset.pattern.permute.xlu0 0
      %361 = vperm.xlu0 %360, %v247
      %v362 = vpop.permute.xlu0 %361
      %365 = vset.pattern.permute.xlu0 0
      %366 = vperm.xlu0 %365, %v248
      %v367 = vpop.permute.xlu0 %366
      %370 = vset.pattern.permute.xlu0 0
      %371 = vperm.xlu0 %370, %v249
      %v372 = vpop.permute.xlu0 %371
      %375 = vset.pattern.permute.xlu0 0
      %376 = vperm.xlu0 %375, %v250
      %v377 = vpop.permute.xlu0 %376
      %380 = vset.pattern.permute.xlu0 0
      %381 = vperm.xlu0 %380, %v251
      %v382 = vpop.permute.xlu0 %381
      %385 = vset.pattern.permute.xlu0 0
      %386 = vperm.xlu0 %385, %v252
      %v387 = vpop.permute.xlu0 %386
      %390 = vset.pattern.permute.xlu0 0
      %391 = vperm.xlu0 %390, %v253
      %v392 = vpop.permute.xlu0 %391
      %395 = vset.pattern.permute.xlu0 0
      %396 = vperm.xlu0 %395, %v254
      %v397 = vpop.permute.xlu0 %396
      %400 = vset.pattern.permute.xlu0 0
      %401 = vperm.xlu0 %400, %v255
      %v402 = vpop.permute.xlu0 %401
      %405 = vset.pattern.permute.xlu0 0
      %406 = vperm.xlu0 %405, %v256
      %v407 = vpop.permute.xlu0 %406
      %410 = vset.pattern.permute.xlu0 0
      %411 = vperm.xlu0 %410, %v257
      %v412 = vpop.permute.xlu0 %411
      %415 = vset.pattern.permute.xlu0 0
      %416 = vperm.xlu0 %415, %v258
      %v417 = vpop.permute.xlu0 %416
      %420 = vset.pattern.permute.xlu0 0
      %421 = vperm.xlu0 %420, %v259
      %v422 = vpop.permute.xlu0 %421
      %425 = vset.pattern.permute.xlu0 0
      %426 = vperm.xlu0 %425, %v260
      %v427 = vpop.permute.xlu0 %426
      %430 = vset.pattern.permute.xlu0 0
      %431 = vperm.xlu0 %430, %v261
      %v432 = vpop.permute.xlu0 %431
      %435 = vset.pattern.permute.xlu0 0
      %436 = vperm.xlu0 %435, %v262
      %v437 = vpop.permute.xlu0 %436
      %440 = vset.pattern.permute.xlu0 0
      %441 = vperm.xlu0 %440, %v263
      %v442 = vpop.permute.xlu0 %441
      %445 = vset.pattern.permute.xlu0 0
      %446 = vperm.xlu0 %445, %v264
      %v447 = vpop.permute.xlu0 %446
      %450 = vset.pattern.permute.xlu0 0
      %451 = vperm.xlu0 %450, %v265
      %v452 = vpop.permute.xlu0 %451
      %455 = vset.pattern.permute.xlu0 0
      %456 = vperm.xlu0 %455, %v266
      %v457 = vpop.permute.xlu0 %456
      %460 = vset.pattern.permute.xlu0 0
      %461 = vperm.xlu0 %460, %v267
      %v462 = vpop.permute.xlu0 %461
      %465 = vset.pattern.permute.xlu0 0
      %466 = vperm.xlu0 %465, %v268
      %v467 = vpop.permute.xlu0 %466
      %470 = vset.pattern.permute.xlu0 0
      %471 = vperm.xlu0 %470, %v269
      %v472 = vpop.permute.xlu0 %471
      %475 = vset.pattern.permute.xlu0 0
      %476 = vperm.xlu0 %475, %v270
      %v477 = vpop.permute.xlu0 %476
      %480 = vset.pattern.permute.xlu0 0
      %481 = vperm.xlu0 %480, %v271
      %v482 = vpop.permute.xlu0 %481
      %485 = vset.pattern.permute.xlu0 0
      %486 = vperm.xlu0 %485, %v272
      %v487 = vpop.permute.xlu0 %486
      %490 = vset.pattern.permute.xlu0 0
      %491 = vperm.xlu0 %490, %v273
      %v492 = vpop.permute.xlu0 %491
      %495 = vset.pattern.permute.xlu0 0
      %496 = vperm.xlu0 %495, %v274
      %v497 = vpop.permute.xlu0 %496
      %500 = vset.pattern.permute.xlu0 0
      %501 = vperm.xlu0 %500, %v275
      %v502 = vpop.permute.xlu0 %501
      %505 = vset.pattern.permute.xlu0 0
      %506 = vperm.xlu0 %505, %v276
      %v507 = vpop.permute.xlu0 %506
      %510 = vset.pattern.permute.xlu0 0
      %511 = vperm.xlu0 %510, %v277
      %v512 = vpop.permute.xlu0 %511
      %515 = vset.pattern.permute.xlu0 0
      %516 = vperm.xlu0 %515, %v278
      %v517 = vpop.permute.xlu0 %516
      %520 = vset.pattern.permute.xlu0 0
      %521 = vperm.xlu0 %520, %v279
      %v522 = vpop.permute.xlu0 %521
      %525 = vset.pattern.permute.xlu0 0
      %526 = vperm.xlu0 %525, %v280
      %v527 = vpop.permute.xlu0 %526
      %530 = vset.pattern.permute.xlu0 0
      %531 = vperm.xlu0 %530, %v281
      %v532 = vpop.permute.xlu0 %531
      %535 = vset.pattern.permute.xlu0 0
      %536 = vperm.xlu0 %535, %v282
      %v537 = vpop.permute.xlu0 %536
      %540 = vset.pattern.permute.xlu0 0
      %541 = vperm.xlu0 %540, %v283
      %v542 = vpop.permute.xlu0 %541
      %545 = vset.pattern.permute.xlu0 0
      %546 = vperm.xlu0 %545, %v284
      %v547 = vpop.permute.xlu0 %546
      %550 = vset.pattern.permute.xlu0 0
      %551 = vperm.xlu0 %550, %v285
      %v552 = vpop.permute.xlu0 %551
      %555 = vset.pattern.permute.xlu0 0
      %556 = vperm.xlu0 %555, %v286
      %v557 = vpop.permute.xlu0 %556
      %560 = vset.pattern.permute.xlu0 0
      %561 = vperm.xlu0 %560, %v287
      %v562 = vpop.permute.xlu0 %561
      %565 = vset.pattern.permute.xlu0 0
      %566 = vperm.xlu0 %565, %v288
      %v567 = vpop.permute.xlu0 %566
      %570 = vset.pattern.permute.xlu0 0
      %571 = vperm.xlu0 %570, %v289
      %v572 = vpop.permute.xlu0 %571
      %575 = vset.pattern.permute.xlu0 0
      %576 = vperm.xlu0 %575, %v290
      %v577 = vpop.permute.xlu0 %576
      %580 = vset.pattern.permute.xlu0 0
      %581 = vperm.xlu0 %580, %v291
      %v582 = vpop.permute.xlu0 %581
      %585 = vset.pattern.permute.xlu0 0
      %586 = vperm.xlu0 %585, %v292
      %v587 = vpop.permute.xlu0 %586
      %590 = vset.pattern.permute.xlu0 0
      %591 = vperm.xlu0 %590, %v293
      %v592 = vpop.permute.xlu0 %591
      %595 = vset.pattern.permute.xlu0 0
      %596 = vperm.xlu0 %595, %v294
      %v597 = vpop.permute.xlu0 %596
      %600 = vset.pattern.permute.xlu0 0
      %601 = vperm.xlu0 %600, %v295
      %v602 = vpop.permute.xlu0 %601
      %605 = vset.pattern.permute.xlu0 0
      %606 = vperm.xlu0 %605, %v296
      %v607 = vpop.permute.xlu0 %606
      %610 = vset.pattern.permute.xlu0 0
      %611 = vperm.xlu0 %610, %v297
      %v612 = vpop.permute.xlu0 %611
      %615 = vset.pattern.permute.xlu0 0
      %616 = vperm.xlu0 %615, %v298
      %v617 = vpop.permute.xlu0 %616
      %v619 = vadd.f32 %v171, %v302
      %v620 = vadd.f32 %v172, %v307
      %v621 = vadd.f32 %v173, %v312
      %v622 = vadd.f32 %v174, %v317
      %v623 = vadd.f32 %v175, %v322
      %v624 = vadd.f32 %v176, %v327
      %v625 = vadd.f32 %v177, %v332
      %v626 = vadd.f32 %v178, %v337
      %v627 = vadd.f32 %v179, %v342
      %v628 = vadd.f32 %v180, %v347
      %v629 = vadd.f32 %v181, %v352
      %v630 = vadd.f32 %v182, %v357
      %v631 = vadd.f32 %v183, %v362
      %v632 = vadd.f32 %v184, %v367
      %v633 = vadd.f32 %v185, %v372
      %v634 = vadd.f32 %v186, %v377
      %v635 = vadd.f32 %v187, %v382
      %v636 = vadd.f32 %v188, %v387
      %v637 = vadd.f32 %v189, %v392
      %v638 = vadd.f32 %v190, %v397
      %v639 = vadd.f32 %v191, %v402
      %v640 = vadd.f32 %v192, %v407
      %v641 = vadd.f32 %v193, %v412
      %v642 = vadd.f32 %v194, %v417
      %v643 = vadd.f32 %v195, %v422
      %v644 = vadd.f32 %v196, %v427
      %v645 = vadd.f32 %v197, %v432
      %v646 = vadd.f32 %v198, %v437
      %v647 = vadd.f32 %v199, %v442
      %v648 = vadd.f32 %v200, %v447
      %v649 = vadd.f32 %v201, %v452
      %v650 = vadd.f32 %v202, %v457
      %v651 = vadd.f32 %v203, %v462
      %v652 = vadd.f32 %v204, %v467
      %v653 = vadd.f32 %v205, %v472
      %v654 = vadd.f32 %v206, %v477
      %v655 = vadd.f32 %v207, %v482
      %v656 = vadd.f32 %v208, %v487
      %v657 = vadd.f32 %v209, %v492
      %v658 = vadd.f32 %v210, %v497
      %v659 = vadd.f32 %v211, %v502
      %v660 = vadd.f32 %v212, %v507
      %v661 = vadd.f32 %v213, %v512
      %v662 = vadd.f32 %v214, %v517
      %v663 = vadd.f32 %v215, %v522
      %v664 = vadd.f32 %v216, %v527
      %v665 = vadd.f32 %v217, %v532
      %v666 = vadd.f32 %v218, %v537
      %v667 = vadd.f32 %v219, %v542
      %v668 = vadd.f32 %v220, %v547
      %v669 = vadd.f32 %v221, %v552
      %v670 = vadd.f32 %v222, %v557
      %v671 = vadd.f32 %v223, %v562
      %v672 = vadd.f32 %v224, %v567
      %v673 = vadd.f32 %v225, %v572
      %v674 = vadd.f32 %v226, %v577
      %v675 = vadd.f32 %v227, %v582
      %v676 = vadd.f32 %v228, %v587
      %v677 = vadd.f32 %v229, %v592
      %v678 = vadd.f32 %v230, %v597
      %v679 = vadd.f32 %v231, %v602
      %v680 = vadd.f32 %v232, %v607
      %v681 = vadd.f32 %v233, %v612
      %v682 = vadd.f32 %v234, %v617
      %vm683 = vcmask 261120
      %684 = vst.msk [vmem:[%s170] sm:$0xff] %vm683, %v619
      %685 = vst.msk [vmem:[%s170 + $0x8] sm:$0xff] %vm683, %v620
      %686 = vst.msk [vmem:[%s170 + $0x10] sm:$0xff] %vm683, %v621
      %687 = vst.msk [vmem:[%s170 + $0x18] sm:$0xff] %vm683, %v622
      %688 = vst.msk [vmem:[%s170 + $0x20] sm:$0xff] %vm683, %v623
      %689 = vst.msk [vmem:[%s170 + $0x28] sm:$0xff] %vm683, %v624
      %690 = vst.msk [vmem:[%s170 + $0x30] sm:$0xff] %vm683, %v625
      %691 = vst.msk [vmem:[%s170 + $0x38] sm:$0xff] %vm683, %v626
      %692 = vst.msk [vmem:[%s170 + $0x40] sm:$0xff] %vm683, %v627
      %693 = vst.msk [vmem:[%s170 + $0x48] sm:$0xff] %vm683, %v628
      %694 = vst.msk [vmem:[%s170 + $0x50] sm:$0xff] %vm683, %v629
      %695 = vst.msk [vmem:[%s170 + $0x58] sm:$0xff] %vm683, %v630
      %696 = vst.msk [vmem:[%s170 + $0x60] sm:$0xff] %vm683, %v631
      %697 = vst.msk [vmem:[%s170 + $0x68] sm:$0xff] %vm683, %v632
      %698 = vst.msk [vmem:[%s170 + $0x70] sm:$0xff] %vm683, %v633
      %699 = vst.msk [vmem:[%s170 + $0x78] sm:$0xff] %vm683, %v634
      %700 = vst.msk [vmem:[%s170 + $0x80] sm:$0xff] %vm683, %v635
      %701 = vst.msk [vmem:[%s170 + $0x88] sm:$0xff] %vm683, %v636
      %702 = vst.msk [vmem:[%s170 + $0x90] sm:$0xff] %vm683, %v637
      %703 = vst.msk [vmem:[%s170 + $0x98] sm:$0xff] %vm683, %v638
      %704 = vst.msk [vmem:[%s170 + $0xa0] sm:$0xff] %vm683, %v639
      %705 = vst.msk [vmem:[%s170 + $0xa8] sm:$0xff] %vm683, %v640
      %706 = vst.msk [vmem:[%s170 + $0xb0] sm:$0xff] %vm683, %v641
      %707 = vst.msk [vmem:[%s170 + $0xb8] sm:$0xff] %vm683, %v642
      %708 = vst.msk [vmem:[%s170 + $0xc0] sm:$0xff] %vm683, %v643
      %709 = vst.msk [vmem:[%s170 + $0xc8] sm:$0xff] %vm683, %v644
      %710 = vst.msk [vmem:[%s170 + $0xd0] sm:$0xff] %vm683, %v645
      %711 = vst.msk [vmem:[%s170 + $0xd8] sm:$0xff] %vm683, %v646
      %712 = vst.msk [vmem:[%s170 + $0xe0] sm:$0xff] %vm683, %v647
      %713 = vst.msk [vmem:[%s170 + $0xe8] sm:$0xff] %vm683, %v648
      %714 = vst.msk [vmem:[%s170 + $0xf0] sm:$0xff] %vm683, %v649
      %715 = vst.msk [vmem:[%s170 + $0xf8] sm:$0xff] %vm683, %v650
      %716 = vst.msk [vmem:[%s170 + $0x100] sm:$0xff] %vm683, %v651
      %717 = vst.msk [vmem:[%s170 + $0x108] sm:$0xff] %vm683, %v652
      %718 = vst.msk [vmem:[%s170 + $0x110] sm:$0xff] %vm683, %v653
      %719 = vst.msk [vmem:[%s170 + $0x118] sm:$0xff] %vm683, %v654
      %720 = vst.msk [vmem:[%s170 + $0x120] sm:$0xff] %vm683, %v655
      %721 = vst.msk [vmem:[%s170 + $0x128] sm:$0xff] %vm683, %v656
      %722 = vst.msk [vmem:[%s170 + $0x130] sm:$0xff] %vm683, %v657
      %723 = vst.msk [vmem:[%s170 + $0x138] sm:$0xff] %vm683, %v658
      %724 = vst.msk [vmem:[%s170 + $0x140] sm:$0xff] %vm683, %v659
      %725 = vst.msk [vmem:[%s170 + $0x148] sm:$0xff] %vm683, %v660
      %726 = vst.msk [vmem:[%s170 + $0x150] sm:$0xff] %vm683, %v661
      %727 = vst.msk [vmem:[%s170 + $0x158] sm:$0xff] %vm683, %v662
      %728 = vst.msk [vmem:[%s170 + $0x160] sm:$0xff] %vm683, %v663
      %729 = vst.msk [vmem:[%s170 + $0x168] sm:$0xff] %vm683, %v664
      %730 = vst.msk [vmem:[%s170 + $0x170] sm:$0xff] %vm683, %v665
      %731 = vst.msk [vmem:[%s170 + $0x178] sm:$0xff] %vm683, %v666
      %732 = vst.msk [vmem:[%s170 + $0x180] sm:$0xff] %vm683, %v667
      %733 = vst.msk [vmem:[%s170 + $0x188] sm:$0xff] %vm683, %v668
      %734 = vst.msk [vmem:[%s170 + $0x190] sm:$0xff] %vm683, %v669
      %735 = vst.msk [vmem:[%s170 + $0x198] sm:$0xff] %vm683, %v670
      %736 = vst.msk [vmem:[%s170 + $0x1a0] sm:$0xff] %vm683, %v671
      %737 = vst.msk [vmem:[%s170 + $0x1a8] sm:$0xff] %vm683, %v672
      %738 = vst.msk [vmem:[%s170 + $0x1b0] sm:$0xff] %vm683, %v673
      %739 = vst.msk [vmem:[%s170 + $0x1b8] sm:$0xff] %vm683, %v674
      %740 = vst.msk [vmem:[%s170 + $0x1c0] sm:$0xff] %vm683, %v675
      %741 = vst.msk [vmem:[%s170 + $0x1c8] sm:$0xff] %vm683, %v676
      %742 = vst.msk [vmem:[%s170 + $0x1d0] sm:$0xff] %vm683, %v677
      %743 = vst.msk [vmem:[%s170 + $0x1d8] sm:$0xff] %vm683, %v678
      %744 = vst.msk [vmem:[%s170 + $0x1e0] sm:$0xff] %vm683, %v679
      %745 = vst.msk [vmem:[%s170 + $0x1e8] sm:$0xff] %vm683, %v680
      %746 = vst.msk [vmem:[%s170 + $0x1f0] sm:$0xff] %vm683, %v681
      %747 = vst.msk [vmem:[%s170 + $0x1f8] sm:$0xff] %vm683, %v682
      %s748 = scalar_lea.vmem %s165, 512
      %v749 = vld [vmem:[%s748] sm:$0xff]
      %v750 = vld [vmem:[%s748 + $0x8] sm:$0xff]
      %v751 = vld [vmem:[%s748 + $0x10] sm:$0xff]
      %v752 = vld [vmem:[%s748 + $0x18] sm:$0xff]
      %v753 = vld [vmem:[%s748 + $0x20] sm:$0xff]
      %v754 = vld [vmem:[%s748 + $0x28] sm:$0xff]
      %v755 = vld [vmem:[%s748 + $0x30] sm:$0xff]
      %v756 = vld [vmem:[%s748 + $0x38] sm:$0xff]
      %v757 = vld [vmem:[%s748 + $0x40] sm:$0xff]
      %v758 = vld [vmem:[%s748 + $0x48] sm:$0xff]
      %v759 = vld [vmem:[%s748 + $0x50] sm:$0xff]
      %v760 = vld [vmem:[%s748 + $0x58] sm:$0xff]
      %v761 = vld [vmem:[%s748 + $0x60] sm:$0xff]
      %v762 = vld [vmem:[%s748 + $0x68] sm:$0xff]
      %v763 = vld [vmem:[%s748 + $0x70] sm:$0xff]
      %v764 = vld [vmem:[%s748 + $0x78] sm:$0xff]
      %v765 = vld [vmem:[%s748 + $0x80] sm:$0xff]
      %v766 = vld [vmem:[%s748 + $0x88] sm:$0xff]
      %v767 = vld [vmem:[%s748 + $0x90] sm:$0xff]
      %v768 = vld [vmem:[%s748 + $0x98] sm:$0xff]
      %v769 = vld [vmem:[%s748 + $0xa0] sm:$0xff]
      %v770 = vld [vmem:[%s748 + $0xa8] sm:$0xff]
      %v771 = vld [vmem:[%s748 + $0xb0] sm:$0xff]
      %v772 = vld [vmem:[%s748 + $0xb8] sm:$0xff]
      %v773 = vld [vmem:[%s748 + $0xc0] sm:$0xff]
      %v774 = vld [vmem:[%s748 + $0xc8] sm:$0xff]
      %v775 = vld [vmem:[%s748 + $0xd0] sm:$0xff]
      %v776 = vld [vmem:[%s748 + $0xd8] sm:$0xff]
      %v777 = vld [vmem:[%s748 + $0xe0] sm:$0xff]
      %v778 = vld [vmem:[%s748 + $0xe8] sm:$0xff]
      %v779 = vld [vmem:[%s748 + $0xf0] sm:$0xff]
      %v780 = vld [vmem:[%s748 + $0xf8] sm:$0xff]
      %v781 = vld [vmem:[%s748 + $0x100] sm:$0xff]
      %v782 = vld [vmem:[%s748 + $0x108] sm:$0xff]
      %v783 = vld [vmem:[%s748 + $0x110] sm:$0xff]
      %v784 = vld [vmem:[%s748 + $0x118] sm:$0xff]
      %v785 = vld [vmem:[%s748 + $0x120] sm:$0xff]
      %v786 = vld [vmem:[%s748 + $0x128] sm:$0xff]
      %v787 = vld [vmem:[%s748 + $0x130] sm:$0xff]
      %v788 = vld [vmem:[%s748 + $0x138] sm:$0xff]
      %v789 = vld [vmem:[%s748 + $0x140] sm:$0xff]
      %v790 = vld [vmem:[%s748 + $0x148] sm:$0xff]
      %v791 = vld [vmem:[%s748 + $0x150] sm:$0xff]
      %v792 = vld [vmem:[%s748 + $0x158] sm:$0xff]
      %v793 = vld [vmem:[%s748 + $0x160] sm:$0xff]
      %v794 = vld [vmem:[%s748 + $0x168] sm:$0xff]
      %v795 = vld [vmem:[%s748 + $0x170] sm:$0xff]
      %v796 = vld [vmem:[%s748 + $0x178] sm:$0xff]
      %v797 = vld [vmem:[%s748 + $0x180] sm:$0xff]
      %v798 = vld [vmem:[%s748 + $0x188] sm:$0xff]
      %v799 = vld [vmem:[%s748 + $0x190] sm:$0xff]
      %v800 = vld [vmem:[%s748 + $0x198] sm:$0xff]
      %v801 = vld [vmem:[%s748 + $0x1a0] sm:$0xff]
      %v802 = vld [vmem:[%s748 + $0x1a8] sm:$0xff]
      %v803 = vld [vmem:[%s748 + $0x1b0] sm:$0xff]
      %v804 = vld [vmem:[%s748 + $0x1b8] sm:$0xff]
      %v805 = vld [vmem:[%s748 + $0x1c0] sm:$0xff]
      %v806 = vld [vmem:[%s748 + $0x1c8] sm:$0xff]
      %v807 = vld [vmem:[%s748 + $0x1d0] sm:$0xff]
      %v808 = vld [vmem:[%s748 + $0x1d8] sm:$0xff]
      %v809 = vld [vmem:[%s748 + $0x1e0] sm:$0xff]
      %v810 = vld [vmem:[%s748 + $0x1e8] sm:$0xff]
      %v811 = vld [vmem:[%s748 + $0x1f0] sm:$0xff]
      %v812 = vld [vmem:[%s748 + $0x1f8] sm:$0xff]
      %v813 = vld [vmem:[%s2] sm:$0x1]
      %v814 = vld [vmem:[%s2 + $0x1] sm:$0x1]
      %v815 = vld [vmem:[%s2 + $0x2] sm:$0x1]
      %v816 = vld [vmem:[%s2 + $0x3] sm:$0x1]
      %v817 = vld [vmem:[%s2 + $0x4] sm:$0x1]
      %v818 = vld [vmem:[%s2 + $0x5] sm:$0x1]
      %v819 = vld [vmem:[%s2 + $0x6] sm:$0x1]
      %v820 = vld [vmem:[%s2 + $0x7] sm:$0x1]
      %v821 = vld [vmem:[%s2 + $0x8] sm:$0x1]
      %v822 = vld [vmem:[%s2 + $0x9] sm:$0x1]
      %v823 = vld [vmem:[%s2 + $0xa] sm:$0x1]
      %v824 = vld [vmem:[%s2 + $0xb] sm:$0x1]
      %v825 = vld [vmem:[%s2 + $0xc] sm:$0x1]
      %v826 = vld [vmem:[%s2 + $0xd] sm:$0x1]
      %v827 = vld [vmem:[%s2 + $0xe] sm:$0x1]
      %v828 = vld [vmem:[%s2 + $0xf] sm:$0x1]
      %v829 = vld [vmem:[%s2 + $0x10] sm:$0x1]
      %v830 = vld [vmem:[%s2 + $0x11] sm:$0x1]
      %v831 = vld [vmem:[%s2 + $0x12] sm:$0x1]
      %v832 = vld [vmem:[%s2 + $0x13] sm:$0x1]
      %v833 = vld [vmem:[%s2 + $0x14] sm:$0x1]
      %v834 = vld [vmem:[%s2 + $0x15] sm:$0x1]
      %v835 = vld [vmem:[%s2 + $0x16] sm:$0x1]
      %v836 = vld [vmem:[%s2 + $0x17] sm:$0x1]
      %v837 = vld [vmem:[%s2 + $0x18] sm:$0x1]
      %v838 = vld [vmem:[%s2 + $0x19] sm:$0x1]
      %v839 = vld [vmem:[%s2 + $0x1a] sm:$0x1]
      %v840 = vld [vmem:[%s2 + $0x1b] sm:$0x1]
      %v841 = vld [vmem:[%s2 + $0x1c] sm:$0x1]
      %v842 = vld [vmem:[%s2 + $0x1d] sm:$0x1]
      %v843 = vld [vmem:[%s2 + $0x1e] sm:$0x1]
      %v844 = vld [vmem:[%s2 + $0x1f] sm:$0x1]
      %v877 = vperm.slane %v813, 0
      %v878 = vperm.slane %v814, 0
      %v879 = vperm.slane %v815, 0
      %v880 = vperm.slane %v816, 0
      %v881 = vperm.slane %v817, 0
      %v882 = vperm.slane %v818, 0
      %v883 = vperm.slane %v819, 0
      %v884 = vperm.slane %v820, 0
      %v885 = vperm.slane %v821, 0
      %v886 = vperm.slane %v822, 0
      %v887 = vperm.slane %v823, 0
      %v888 = vperm.slane %v824, 0
      %v889 = vperm.slane %v825, 0
      %v890 = vperm.slane %v826, 0
      %v891 = vperm.slane %v827, 0
      %v892 = vperm.slane %v828, 0
      %v893 = vperm.slane %v829, 0
      %v894 = vperm.slane %v830, 0
      %v895 = vperm.slane %v831, 0
      %v896 = vperm.slane %v832, 0
      %v897 = vperm.slane %v833, 0
      %v898 = vperm.slane %v834, 0
      %v899 = vperm.slane %v835, 0
      %v900 = vperm.slane %v836, 0
      %v901 = vperm.slane %v837, 0
      %v902 = vperm.slane %v838, 0
      %v903 = vperm.slane %v839, 0
      %v904 = vperm.slane %v840, 0
      %v905 = vperm.slane %v841, 0
      %v906 = vperm.slane %v842, 0
      %v907 = vperm.slane %v843, 0
      %v908 = vperm.slane %v844, 0
      %v941 = vadd.f32 %v749, %v877
      %v942 = vadd.f32 %v750, %v877
      %v943 = vadd.f32 %v751, %v878
      %v944 = vadd.f32 %v752, %v878
      %v945 = vadd.f32 %v753, %v879
      %v946 = vadd.f32 %v754, %v879
      %v947 = vadd.f32 %v755, %v880
      %v948 = vadd.f32 %v756, %v880
      %v949 = vadd.f32 %v757, %v881
      %v950 = vadd.f32 %v758, %v881
      %v951 = vadd.f32 %v759, %v882
      %v952 = vadd.f32 %v760, %v882
      %v953 = vadd.f32 %v761, %v883
      %v954 = vadd.f32 %v762, %v883
      %v955 = vadd.f32 %v763, %v884
      %v956 = vadd.f32 %v764, %v884
      %v957 = vadd.f32 %v765, %v885
      %v958 = vadd.f32 %v766, %v885
      %v959 = vadd.f32 %v767, %v886
      %v960 = vadd.f32 %v768, %v886
      %v961 = vadd.f32 %v769, %v887
      %v962 = vadd.f32 %v770, %v887
      %v963 = vadd.f32 %v771, %v888
      %v964 = vadd.f32 %v772, %v888
      %v965 = vadd.f32 %v773, %v889
      %v966 = vadd.f32 %v774, %v889
      %v967 = vadd.f32 %v775, %v890
      %v968 = vadd.f32 %v776, %v890
      %v969 = vadd.f32 %v777, %v891
      %v970 = vadd.f32 %v778, %v891
      %v971 = vadd.f32 %v779, %v892
      %v972 = vadd.f32 %v780, %v892
      %v973 = vadd.f32 %v781, %v893
      %v974 = vadd.f32 %v782, %v893
      %v975 = vadd.f32 %v783, %v894
      %v976 = vadd.f32 %v784, %v894
      %v977 = vadd.f32 %v785, %v895
      %v978 = vadd.f32 %v786, %v895
      %v979 = vadd.f32 %v787, %v896
      %v980 = vadd.f32 %v788, %v896
      %v981 = vadd.f32 %v789, %v897
      %v982 = vadd.f32 %v790, %v897
      %v983 = vadd.f32 %v791, %v898
      %v984 = vadd.f32 %v792, %v898
      %v985 = vadd.f32 %v793, %v899
      %v986 = vadd.f32 %v794, %v899
      %v987 = vadd.f32 %v795, %v900
      %v988 = vadd.f32 %v796, %v900
      %v989 = vadd.f32 %v797, %v901
      %v990 = vadd.f32 %v798, %v901
      %v991 = vadd.f32 %v799, %v902
      %v992 = vadd.f32 %v800, %v902
      %v993 = vadd.f32 %v801, %v903
      %v994 = vadd.f32 %v802, %v903
      %v995 = vadd.f32 %v803, %v904
      %v996 = vadd.f32 %v804, %v904
      %v997 = vadd.f32 %v805, %v905
      %v998 = vadd.f32 %v806, %v905
      %v999 = vadd.f32 %v807, %v906
      %v1000 = vadd.f32 %v808, %v906
      %v1001 = vadd.f32 %v809, %v907
      %v1002 = vadd.f32 %v810, %v907
      %v1003 = vadd.f32 %v811, %v908
      %v1004 = vadd.f32 %v812, %v908
      %s1005 = scalar_lea.vmem %s170, 512
      %1006 = vst.msk [vmem:[%s1005] sm:$0xff] %vm683, %v941
      %1007 = vst.msk [vmem:[%s1005 + $0x8] sm:$0xff] %vm683, %v942
      %1008 = vst.msk [vmem:[%s1005 + $0x10] sm:$0xff] %vm683, %v943
      %1009 = vst.msk [vmem:[%s1005 + $0x18] sm:$0xff] %vm683, %v944
      %1010 = vst.msk [vmem:[%s1005 + $0x20] sm:$0xff] %vm683, %v945
      %1011 = vst.msk [vmem:[%s1005 + $0x28] sm:$0xff] %vm683, %v946
      %1012 = vst.msk [vmem:[%s1005 + $0x30] sm:$0xff] %vm683, %v947
      %1013 = vst.msk [vmem:[%s1005 + $0x38] sm:$0xff] %vm683, %v948
      %1014 = vst.msk [vmem:[%s1005 + $0x40] sm:$0xff] %vm683, %v949
      %1015 = vst.msk [vmem:[%s1005 + $0x48] sm:$0xff] %vm683, %v950
      %1016 = vst.msk [vmem:[%s1005 + $0x50] sm:$0xff] %vm683, %v951
      %1017 = vst.msk [vmem:[%s1005 + $0x58] sm:$0xff] %vm683, %v952
      %1018 = vst.msk [vmem:[%s1005 + $0x60] sm:$0xff] %vm683, %v953
      %1019 = vst.msk [vmem:[%s1005 + $0x68] sm:$0xff] %vm683, %v954
      %1020 = vst.msk [vmem:[%s1005 + $0x70] sm:$0xff] %vm683, %v955
      %1021 = vst.msk [vmem:[%s1005 + $0x78] sm:$0xff] %vm683, %v956
      %1022 = vst.msk [vmem:[%s1005 + $0x80] sm:$0xff] %vm683, %v957
      %1023 = vst.msk [vmem:[%s1005 + $0x88] sm:$0xff] %vm683, %v958
      %1024 = vst.msk [vmem:[%s1005 + $0x90] sm:$0xff] %vm683, %v959
      %1025 = vst.msk [vmem:[%s1005 + $0x98] sm:$0xff] %vm683, %v960
      %1026 = vst.msk [vmem:[%s1005 + $0xa0] sm:$0xff] %vm683, %v961
      %1027 = vst.msk [vmem:[%s1005 + $0xa8] sm:$0xff] %vm683, %v962
      %1028 = vst.msk [vmem:[%s1005 + $0xb0] sm:$0xff] %vm683, %v963
      %1029 = vst.msk [vmem:[%s1005 + $0xb8] sm:$0xff] %vm683, %v964
      %1030 = vst.msk [vmem:[%s1005 + $0xc0] sm:$0xff] %vm683, %v965
      %1031 = vst.msk [vmem:[%s1005 + $0xc8] sm:$0xff] %vm683, %v966
      %1032 = vst.msk [vmem:[%s1005 + $0xd0] sm:$0xff] %vm683, %v967
      %1033 = vst.msk [vmem:[%s1005 + $0xd8] sm:$0xff] %vm683, %v968
      %1034 = vst.msk [vmem:[%s1005 + $0xe0] sm:$0xff] %vm683, %v969
      %1035 = vst.msk [vmem:[%s1005 + $0xe8] sm:$0xff] %vm683, %v970
      %1036 = vst.msk [vmem:[%s1005 + $0xf0] sm:$0xff] %vm683, %v971
      %1037 = vst.msk [vmem:[%s1005 + $0xf8] sm:$0xff] %vm683, %v972
      %1038 = vst.msk [vmem:[%s1005 + $0x100] sm:$0xff] %vm683, %v973
      %1039 = vst.msk [vmem:[%s1005 + $0x108] sm:$0xff] %vm683, %v974
      %1040 = vst.msk [vmem:[%s1005 + $0x110] sm:$0xff] %vm683, %v975
      %1041 = vst.msk [vmem:[%s1005 + $0x118] sm:$0xff] %vm683, %v976
      %1042 = vst.msk [vmem:[%s1005 + $0x120] sm:$0xff] %vm683, %v977
      %1043 = vst.msk [vmem:[%s1005 + $0x128] sm:$0xff] %vm683, %v978
      %1044 = vst.msk [vmem:[%s1005 + $0x130] sm:$0xff] %vm683, %v979
      %1045 = vst.msk [vmem:[%s1005 + $0x138] sm:$0xff] %vm683, %v980
      %1046 = vst.msk [vmem:[%s1005 + $0x140] sm:$0xff] %vm683, %v981
      %1047 = vst.msk [vmem:[%s1005 + $0x148] sm:$0xff] %vm683, %v982
      %1048 = vst.msk [vmem:[%s1005 + $0x150] sm:$0xff] %vm683, %v983
      %1049 = vst.msk [vmem:[%s1005 + $0x158] sm:$0xff] %vm683, %v984
      %1050 = vst.msk [vmem:[%s1005 + $0x160] sm:$0xff] %vm683, %v985
      %1051 = vst.msk [vmem:[%s1005 + $0x168] sm:$0xff] %vm683, %v986
      %1052 = vst.msk [vmem:[%s1005 + $0x170] sm:$0xff] %vm683, %v987
      %1053 = vst.msk [vmem:[%s1005 + $0x178] sm:$0xff] %vm683, %v988
      %1054 = vst.msk [vmem:[%s1005 + $0x180] sm:$0xff] %vm683, %v989
      %1055 = vst.msk [vmem:[%s1005 + $0x188] sm:$0xff] %vm683, %v990
      %1056 = vst.msk [vmem:[%s1005 + $0x190] sm:$0xff] %vm683, %v991
      %1057 = vst.msk [vmem:[%s1005 + $0x198] sm:$0xff] %vm683, %v992
      %1058 = vst.msk [vmem:[%s1005 + $0x1a0] sm:$0xff] %vm683, %v993
      %1059 = vst.msk [vmem:[%s1005 + $0x1a8] sm:$0xff] %vm683, %v994
      %1060 = vst.msk [vmem:[%s1005 + $0x1b0] sm:$0xff] %vm683, %v995
      %1061 = vst.msk [vmem:[%s1005 + $0x1b8] sm:$0xff] %vm683, %v996
      %1062 = vst.msk [vmem:[%s1005 + $0x1c0] sm:$0xff] %vm683, %v997
      %1063 = vst.msk [vmem:[%s1005 + $0x1c8] sm:$0xff] %vm683, %v998
      %1064 = vst.msk [vmem:[%s1005 + $0x1d0] sm:$0xff] %vm683, %v999
      %1065 = vst.msk [vmem:[%s1005 + $0x1d8] sm:$0xff] %vm683, %v1000
      %1066 = vst.msk [vmem:[%s1005 + $0x1e0] sm:$0xff] %vm683, %v1001
      %1067 = vst.msk [vmem:[%s1005 + $0x1e8] sm:$0xff] %vm683, %v1002
      %1068 = vst.msk [vmem:[%s1005 + $0x1f0] sm:$0xff] %vm683, %v1003
      %1069 = vst.msk [vmem:[%s1005 + $0x1f8] sm:$0xff] %vm683, %v1004
      %p1070 = scmp.lt.s32.totalorder %s14, 1
      %s1071 = scalar_select %p1070, %s14, 1
      %s1072 = smul.addr %s1071, 128
      %s1073 = smul.addr %s1072, 8
      %s1074 = scalar_lea.vmem %s3, %s1073
      // Predicated region
      $region33: #{positional_encoding_2d.1} parent=31 // pred_check
        %p1075 = pneg %p100
      $region34: #{positional_encoding_2d.1} parent=31 // pred_check_branch
        %1077 = sbr.rel (%p1075) target = $region36
      $region35: #{positional_encoding_2d.1} parent=31 // pred_region
        _
      $region36: #{positional_encoding_2d.1} parent=31 // pred_fallthru
        _
    $region32: #{positional_encoding_2d.1} parent=5 // pred_fallthru
      _
    %p1078 = scmp.le.s32.totalorder 2, %s9
    // Predicated region
    $region37: #{positional_encoding_2d.1} parent=5 // pred_check
      %p1079 = pneg %p1078
    $region38: #{positional_encoding_2d.1} parent=5 // pred_check_branch
      %1081 = sbr.rel (%p1079) target = $region40
    $region39: #{positional_encoding_2d.1} parent=5 // pred_region
      %s1082 = ssub.s32 %s9, 2
      // Predicated region
      $region41: #{positional_encoding_2d.1} parent=39 // pred_check
        %p1083 = pneg %p106
      $region42: #{positional_encoding_2d.1} parent=39 // pred_check_branch
        %1085 = sbr.rel (%p1083) target = $region44
      $region43: #{positional_encoding_2d.1} parent=39 // pred_region
        %p1086 = scmp.lt.s32.totalorder %s15, 1
        %s1087 = scalar_select %p1086, %s15, 1
        %s1088 = smul.addr %s1087, 128
        %s1089 = smul.addr %s1088, 8
        %s1090 = scalar_lea.vmem %s3, %s1089
      $region44: #{positional_encoding_2d.1} parent=39 // pred_fallthru
        _
    $region40: #{positional_encoding_2d.1} parent=5 // pred_fallthru
      _
  $region6: #{positional_encoding_2d.1} parent=0 // loop_footer
    %s13 = sadd.s32 1, %s9
  $region7: #{positional_encoding_2d.1} parent=0 // loop_footer_branch
    %8 = sbr.rel target = $region3
  $region8: #{positional_encoding_2d.1} parent=0 // loop_exit
    _

</llo_original>
